<compile_context>
chip_gen: v6e
topology: v6e:2x2x1
jax: 0.10.0
libtpu: 0.0.40
codegen_flags: <defaults>
</compile_context>

<pallas_src>
import jax
import jax.numpy as jnp
from jax import lax
from jax.experimental import pallas as pl
from jax.experimental.pallas import tpu as pltpu

NEG_FILL = -100000000.0  # matches PyTorch align.masked_fill_(~mask, -1e8)


def attention_kernel(k_lens_ref, q_ref, k_ref, ctx_ref, w_ref):
    b = pl.program_id(0)

    q = q_ref[...].astype(jnp.float32)  # (N, D)
    k = k_ref[...].astype(jnp.float32)  # (M, D)

    # scores = q @ k.T : contract the last dims directly (no materialized transpose).
    scores = lax.dot_general(
        q, k, (((1,), (1,)), ((), ())), preferred_element_type=jnp.float32
    )  # (N, M)

    # Mask out key positions m >= k_lens[b].
    klen = k_lens_ref[b]
    col = lax.broadcasted_iota(jnp.int32, scores.shape, 1)
    scores = jnp.where(col < klen, scores, NEG_FILL)

    # Softmax over the key axis (axis=-1).
    m_max = jnp.max(scores, axis=-1, keepdims=True)
    e = jnp.exp(scores - m_max)
    denom = jnp.sum(e, axis=-1, keepdims=True)
    w = e / denom  # (pl.reciprocal(denom, approx=True) is a perf knob; kept exact here)

    w_ref[...] = w.astype(w_ref.dtype)
    # contexts = attn_weights @ keys
    ctx_ref[...] = jnp.dot(
        w, k, preferred_element_type=jnp.float32
    ).astype(ctx_ref.dtype)


def attention_pallas(query, keys, k_lens=None):
    """query: [B, N, D]; keys: [B, M, D]; k_lens: [B] int32 (optional).

    Returns (contexts [B, N, D], attn_weights [B, N, M]) — same as the PyTorch
    Attention.forward(query, keys, q_lens, k_lens) with method='dot'.
    """
    B, N, D = query.shape
    Bk, M, Dk = keys.shape
    assert B == Bk and D == Dk

    if k_lens is None:
        k_lens = jnp.full((B,), M, dtype=jnp.int32)
    k_lens = k_lens.astype(jnp.int32)

    q_spec = pl.BlockSpec((None, N, D), lambda b, lens: (b, 0, 0))
    k_spec = pl.BlockSpec((None, M, D), lambda b, lens: (b, 0, 0))
    ctx_spec = pl.BlockSpec((None, N, D), lambda b, lens: (b, 0, 0))
    w_spec = pl.BlockSpec((None, N, M), lambda b, lens: (b, 0, 0))

    contexts, attn_weights = pl.pallas_call(
        attention_kernel,
        out_shape=(
            jax.ShapeDtypeStruct((B, N, D), query.dtype),
            jax.ShapeDtypeStruct((B, N, M), query.dtype),
        ),
        grid_spec=pltpu.PrefetchScalarGridSpec(
            num_scalar_prefetch=1,
            grid=(B,),
            in_specs=[q_spec, k_spec],
            out_specs=(ctx_spec, w_spec),
        ),
        compiler_params=pltpu.CompilerParams(
            dimension_semantics=("parallel",),
        ),
    )(k_lens, query, keys)
    return contexts, attn_weights


def attention_ref(query, keys, k_lens):
    """Pure-JAX reference mirroring the PyTorch forward (method='dot')."""
    B, N, D = query.shape
    M = keys.shape[1]
    scores = jnp.einsum("bnd,bmd->bnm", query, keys)
    mask = jnp.arange(M)[None, :] < k_lens[:, None]  # (B, M)
    scores = jnp.where(mask[:, None, :], scores, NEG_FILL)
    w = jax.nn.softmax(scores, axis=-1)
    ctx = jnp.einsum("bnm,bmd->bnd", w, keys)
    return ctx, w


if __name__ == "__main__":
    batch = 2
    query_num = 8      # N
    key_num = 128      # M (lane-aligned)
    input_size = 128   # D (lane-aligned)

    key = jax.random.PRNGKey(0)
    kq, kk = jax.random.split(key)
    query = jax.random.normal(kq, (batch, query_num, input_size), jnp.float32)
    keys = jax.random.normal(kk, (batch, key_num, input_size), jnp.float32)
    k_lens = jnp.array([100, 128], dtype=jnp.int32)

    ctx, attn_w = attention_pallas(query, keys, k_lens)
    ctx = jax.block_until_ready(ctx)
    attn_w = jax.block_until_ready(attn_w)

    ctx_ref, w_ref = attention_ref(query, keys, k_lens)

    assert ctx.shape == (batch, query_num, input_size)
    assert attn_w.shape == (batch, query_num, key_num)
    assert jnp.allclose(attn_w, w_ref, atol=1e-5, rtol=1e-5), "attn_weights mismatch"
    assert jnp.allclose(ctx, ctx_ref, atol=1e-4, rtol=1e-4), "contexts mismatch"

    print("KERNEL_OK")
</pallas_src>

<mosaic_0001>
module attributes {stable_mosaic.version = 11 : i64} {
  func.func @attention_kernel(%arg0: i32, %arg1: memref<2xi32, #tpu.memory_space<smem>>, %arg2: memref<1x8x128xf32, #tpu.memory_space<vmem>>, %arg3: memref<1x128x128xf32, #tpu.memory_space<vmem>>, %arg4: memref<1x8x128xf32, #tpu.memory_space<vmem>>, %arg5: memref<1x8x128xf32, #tpu.memory_space<vmem>>) attributes {dimension_semantics = [#tpu.dimension_semantics<parallel>], iteration_bounds = array<i64: 2>, scalar_prefetch = 1 : i64, scratch_operands = 0 : i64, tpu.core_type = #tpu.core_type<tc>, window_params = [{transform_indices = @transform_0, window_bounds = array<i64: 1, 8, 128>}, {transform_indices = @transform_1, window_bounds = array<i64: 1, 128, 128>}, {transform_indices = @transform_2, window_bounds = array<i64: 1, 8, 128>}, {transform_indices = @transform_3, window_bounds = array<i64: 1, 8, 128>}]} {
    %c0 = arith.constant 0 : index
    %c0_0 = arith.constant 0 : index
    %c0_1 = arith.constant 0 : index
    %0 = vector.load %arg2[%c0, %c0_0, %c0_1] : memref<1x8x128xf32, #tpu.memory_space<vmem>>, vector<1x8x128xf32>
    %1 = vector.shape_cast %0 : vector<1x8x128xf32> to vector<8x128xf32>
    %c0_2 = arith.constant 0 : index
    %c0_3 = arith.constant 0 : index
    %c0_4 = arith.constant 0 : index
    %2 = vector.load %arg3[%c0_2, %c0_3, %c0_4] : memref<1x128x128xf32, #tpu.memory_space<vmem>>, vector<1x128x128xf32>
    %3 = vector.shape_cast %2 : vector<1x128x128xf32> to vector<128x128xf32>
    %cst = arith.constant dense<0.000000e+00> : vector<8x128xf32>
    %4 = tpu.matmul %1, %3, %cst {dimension_numbers = #tpu.dot_dimension_numbers<[1], [1], [0], [0], [0, 0, 1, 0], [], []>} : vector<8x128xf32>, vector<128x128xf32>, vector<8x128xf32> -> vector<8x128xf32>
    %5 = arith.index_cast %arg0 : i32 to index
    %6 = memref.load %arg1[%5] : memref<2xi32, #tpu.memory_space<smem>>
    %7 = tpu.iota {dimensions = array<i32: 1>} : vector<8x128xi32>
    %8 = vector.broadcast %6 : i32 to vector<8x128xi32>
    %9 = arith.cmpi slt, %7, %8 : vector<8x128xi32>
    %cst_5 = arith.constant -1.000000e+08 : f32
    %10 = vector.broadcast %cst_5 : f32 to vector<8x128xf32>
    %11 = arith.select %9, %4, %10 : vector<8x128xi1>, vector<8x128xf32>
    %cst_6 = arith.constant dense<0xFF800000> : vector<8xf32>
    %12 = vector.multi_reduction <maximumf>, %11, %cst_6 [1] : vector<8x128xf32> to vector<8xf32>
    %13 = vector.shape_cast %12 : vector<8xf32> to vector<8x1xf32>
    %14 = vector.broadcast %13 : vector<8x1xf32> to vector<8x128xf32>
    %15 = arith.subf %11, %14 : vector<8x128xf32>
    %16 = math.exp %15 : vector<8x128xf32>
    %cst_7 = arith.constant dense<0.000000e+00> : vector<8xf32>
    %17 = vector.multi_reduction <add>, %16, %cst_7 [1] : vector<8x128xf32> to vector<8xf32>
    %18 = vector.shape_cast %17 : vector<8xf32> to vector<8x1xf32>
    %19 = vector.broadcast %18 : vector<8x1xf32> to vector<8x128xf32>
    %20 = arith.divf %16, %19 : vector<8x128xf32>
    %c0_8 = arith.constant 0 : index
    %c0_9 = arith.constant 0 : index
    %c0_10 = arith.constant 0 : index
    %21 = vector.load %arg5[%c0_8, %c0_9, %c0_10] : memref<1x8x128xf32, #tpu.memory_space<vmem>>, vector<1x8x128xf32>
    %22 = vector.shape_cast %21 : vector<1x8x128xf32> to vector<8x128xf32>
    %23 = vector.shape_cast %20 : vector<8x128xf32> to vector<1x8x128xf32>
    tpu.vector_store %arg5[%c0_8, %c0_9, %c0_10], %23 {strides = array<i32>} : memref<1x8x128xf32, #tpu.memory_space<vmem>>, vector<1x8x128xf32>,
    %cst_11 = arith.constant dense<0.000000e+00> : vector<8x128xf32>
    %24 = tpu.matmul %20, %3, %cst_11 {dimension_numbers = #tpu.dot_dimension_numbers<[1], [0], [0], [1], [0, 0, 1, 1], [], []>} : vector<8x128xf32>, vector<128x128xf32>, vector<8x128xf32> -> vector<8x128xf32>
    %c0_12 = arith.constant 0 : index
    %c0_13 = arith.constant 0 : index
    %c0_14 = arith.constant 0 : index
    %25 = vector.load %arg4[%c0_12, %c0_13, %c0_14] : memref<1x8x128xf32, #tpu.memory_space<vmem>>, vector<1x8x128xf32>
    %26 = vector.shape_cast %25 : vector<1x8x128xf32> to vector<8x128xf32>
    %27 = vector.shape_cast %24 : vector<8x128xf32> to vector<1x8x128xf32>
    tpu.vector_store %arg4[%c0_12, %c0_13, %c0_14], %27 {strides = array<i32>} : memref<1x8x128xf32, #tpu.memory_space<vmem>>, vector<1x8x128xf32>,
    return
  }
  func.func @transform_0(%arg0: i32, %arg1: memref<2xi32, #tpu.memory_space<smem>>) -> (i32, i32, i32) {
    %c0_i32 = arith.constant 0 : i32
    %c0_i32_0 = arith.constant 0 : i32
    %c0_i32_1 = arith.constant 0 : i32
    return %arg0, %c0_i32, %c0_i32_0 : i32, i32, i32
  }
  func.func @transform_1(%arg0: i32, %arg1: memref<2xi32, #tpu.memory_space<smem>>) -> (i32, i32, i32) {
    %c0_i32 = arith.constant 0 : i32
    %c0_i32_0 = arith.constant 0 : i32
    %c0_i32_1 = arith.constant 0 : i32
    return %arg0, %c0_i32, %c0_i32_0 : i32, i32, i32
  }
  func.func @transform_2(%arg0: i32, %arg1: memref<2xi32, #tpu.memory_space<smem>>) -> (i32, i32, i32) {
    %c0_i32 = arith.constant 0 : i32
    %c0_i32_0 = arith.constant 0 : i32
    %c0_i32_1 = arith.constant 0 : i32
    return %arg0, %c0_i32, %c0_i32_0 : i32, i32, i32
  }
  func.func @transform_3(%arg0: i32, %arg1: memref<2xi32, #tpu.memory_space<smem>>) -> (i32, i32, i32) {
    %c0_i32 = arith.constant 0 : i32
    %c0_i32_0 = arith.constant 0 : i32
    %c0_i32_1 = arith.constant 0 : i32
    return %arg0, %c0_i32, %c0_i32_0 : i32, i32, i32
  }
}

</mosaic_0001>

<llo_original>
// kernel: tpu_custom_call.1
$region0: #{tpu_custom_call.1}
  #allocation0 [shape = 'u32[]', space=smem, size = 0x4, offset = 0x4, fixed_abs, tag = 'smem constant byte address 0x4 - core index']
  #allocation1 [shape = 'u32[144,128]{1,0:T(1,128)}', space=vmem, size = 0x12000, scoped, tag = 'internal scratch']
  #allocation2 [shape = 's32[1]{0}', space=sflag, size = 0x4, scoped, tag = 'scoped memory for tpu_custom_call.1']
  #allocation3 [shape = 'u8[512]{0}', space=smem, size = 0x200, scoped, tag = 'prefetched SMEM operand 0']
  %s0 = inlined_call_operand.hbm [shape: s32[2], index: 0, kind: input, shape index: {}]
  %s1 = inlined_call_operand.hbm [shape: f32[2,8,128], index: 1, kind: input, shape index: {}]
  %s2 = inlined_call_operand.hbm [shape: f32[2,128,128], index: 2, kind: input, shape index: {}]
  %s3 = inlined_call_operand.hbm [shape: f32[2,8,128], index: 3, kind: output, shape index: {0}]
  %s4 = inlined_call_operand.hbm [shape: f32[2,8,128], index: 4, kind: output, shape index: {1}]
  %5 = xla_tuple %s3, %s4
  %s6 = sld [smem:[#allocation0]]
  $region57: #{tpu_custom_call.1} parent=0
    _
  %s8 = ssub.s32 1, %s6
  %s9 = scalar_select 0, %s8, %s6
  %11 = dma.hbm_to_smem %s0, 16, [#allocation3], [#allocation2]
  %12 = dma.done [#allocation2], 16
  %13 = sfence
  $region1: #{tpu_custom_call.1} parent=0
    #allocation4 [shape = 'u8[8192]{0}', space=vmem, size = 0x2000, scoped, tag = 'input window, operand 1']
    #allocation5 [shape = 's32[2]{0}', space=sflag, size = 0x8, scoped, tag = 'scoped memory for tpu_custom_call.1']
    #allocation6 [shape = 's32[2]{0}', space=sflag, size = 0x8, scoped, tag = 'scoped memory for tpu_custom_call.1']
    #allocation7 [shape = 'u8[131072]{0}', space=vmem, size = 0x20000, scoped, tag = 'input window, operand 2']
    #allocation8 [shape = 's32[2]{0}', space=sflag, size = 0x8, scoped, tag = 'scoped memory for tpu_custom_call.1']
    #allocation9 [shape = 'u8[8192]{0}', space=vmem, size = 0x2000, scoped, tag = 'output window, operand 0']
    #allocation10 [shape = 'u8[8192]{0}', space=vmem, size = 0x2000, scoped, tag = 'output window, operand 1']
    #allocation11 [shape = 's32[2]{0}', space=sflag, size = 0x8, scoped, tag = 'scoped memory for tpu_custom_call.1']
    %14 = vsyncpa [#allocation5], 0
    %s15 = scalar_lea.sflag [#allocation5], 1
    %16 = vsyncpa %s15, 0
    %17 = vsyncpa [#allocation8], 0
    %s18 = scalar_lea.sflag [#allocation8], 1
    %19 = vsyncpa %s18, 0
    %20 = vsyncpa [#allocation6], 0
    %s21 = scalar_lea.sflag [#allocation6], 1
    %22 = vsyncpa %s21, 0
    %23 = vsyncpa [#allocation11], 0
    %s24 = scalar_lea.sflag [#allocation11], 1
    %25 = vsyncpa %s24, 0
    loop: start=0, step=1, limit=4
    $region2: #{tpu_custom_call.1} parent=1 // loop_pre_header
      _
    $region3: #{tpu_custom_call.1} parent=1 // loop_header
      %s27 = sphi 0, %s31
      %p28 = scmp.ge.s32.totalorder %s27, 4
      %s37 = sphi 0, %s39
      %s40 = sphi 0, %s37
      %s41 = sphi 0, %s40
      %s57 = sphi 0, %s41
      %s63 = sphi 0, %s65
      %s66 = sphi 0, %s63
      %s67 = sphi 0, %s66
      %s83 = sphi 0, %s67
      %s89 = sphi 0, %s91
      %s92 = sphi 0, %s89
      %s93 = sphi 0, %s92
      %s109 = sphi 0, %s93
      %s115 = sphi 0, %s117
      %s118 = sphi 0, %s115
      %s119 = sphi 0, %s118
      %s135 = sphi 0, %s119
    $region4: #{tpu_custom_call.1} parent=1 // loop_header_branch
      %30 = sbr.rel (%p28) target = $region8
    $region5: #{tpu_custom_call.1} parent=1 // loop_body
      %s32 = ssub.s32 %s27, 1
      %s33 = ssub.s32 %s27, 2
      %s34 = sadd.s32 %s27, 1
      %s35 = ssub.s32 %s27, %s34
      %p36 = scmp.eq.s32.totalorder %s35, 0
      %s38 = sadd.s32 %s37, 1
      %s39 = scalar_select %p36, %s37, %s38
      %p42 = pneg %p36
      %p43 = scmp.eq.s32.totalorder %s27, 1
      %p44 = por %p42, %p43
      %p45 = scmp.ne.s32.totalorder %s37, %s40
      %p46 = scmp.eq.s32.totalorder %s27, 0
      %p47 = por %p45, %p46
      %p48 = scmp.ne.s32.totalorder %s37, %s40
      %p49 = scmp.eq.s32.totalorder %s32, 1
      %p50 = por %p48, %p49
      %p51 = scmp.ne.s32.totalorder %s40, %s41
      %p52 = scmp.eq.s32.totalorder %s32, 0
      %p53 = por %p51, %p52
      %p54 = scmp.ne.s32.totalorder %s40, %s41
      %p55 = scmp.eq.s32.totalorder %s33, 1
      %p56 = por %p54, %p55
      %p58 = scmp.ne.s32.totalorder %s41, %s57
      %p59 = scmp.eq.s32.totalorder %s33, 0
      %p60 = por %p58, %p59
      %s61 = ssub.s32 %s27, %s34
      %p62 = scmp.eq.s32.totalorder %s61, 0
      %s64 = sadd.s32 %s63, 1
      %s65 = scalar_select %p62, %s63, %s64
      %p68 = pneg %p62
      %p69 = scmp.eq.s32.totalorder %s27, 1
      %p70 = por %p68, %p69
      %p71 = scmp.ne.s32.totalorder %s63, %s66
      %p72 = scmp.eq.s32.totalorder %s27, 0
      %p73 = por %p71, %p72
      %p74 = scmp.ne.s32.totalorder %s63, %s66
      %p75 = scmp.eq.s32.totalorder %s32, 1
      %p76 = por %p74, %p75
      %p77 = scmp.ne.s32.totalorder %s66, %s67
      %p78 = scmp.eq.s32.totalorder %s32, 0
      %p79 = por %p77, %p78
      %p80 = scmp.ne.s32.totalorder %s66, %s67
      %p81 = scmp.eq.s32.totalorder %s33, 1
      %p82 = por %p80, %p81
      %p84 = scmp.ne.s32.totalorder %s67, %s83
      %p85 = scmp.eq.s32.totalorder %s33, 0
      %p86 = por %p84, %p85
      %s87 = ssub.s32 %s27, %s34
      %p88 = scmp.eq.s32.totalorder %s87, 0
      %s90 = sadd.s32 %s89, 1
      %s91 = scalar_select %p88, %s89, %s90
      %p94 = pneg %p88
      %p95 = scmp.eq.s32.totalorder %s27, 1
      %p96 = por %p94, %p95
      %p97 = scmp.ne.s32.totalorder %s89, %s92
      %p98 = scmp.eq.s32.totalorder %s27, 0
      %p99 = por %p97, %p98
      %p100 = scmp.ne.s32.totalorder %s89, %s92
      %p101 = scmp.eq.s32.totalorder %s32, 1
      %p102 = por %p100, %p101
      %p103 = scmp.ne.s32.totalorder %s92, %s93
      %p104 = scmp.eq.s32.totalorder %s32, 0
      %p105 = por %p103, %p104
      %p106 = scmp.ne.s32.totalorder %s92, %s93
      %p107 = scmp.eq.s32.totalorder %s33, 1
      %p108 = por %p106, %p107
      %p110 = scmp.ne.s32.totalorder %s93, %s109
      %p111 = scmp.eq.s32.totalorder %s33, 0
      %p112 = por %p110, %p111
      %s113 = ssub.s32 %s27, %s34
      %p114 = scmp.eq.s32.totalorder %s113, 0
      %s116 = sadd.s32 %s115, 1
      %s117 = scalar_select %p114, %s115, %s116
      %p120 = pneg %p114
      %p121 = scmp.eq.s32.totalorder %s27, 1
      %p122 = por %p120, %p121
      %p123 = scmp.ne.s32.totalorder %s115, %s118
      %p124 = scmp.eq.s32.totalorder %s27, 0
      %p125 = por %p123, %p124
      %p126 = scmp.ne.s32.totalorder %s115, %s118
      %p127 = scmp.eq.s32.totalorder %s32, 1
      %p128 = por %p126, %p127
      %p129 = scmp.ne.s32.totalorder %s118, %s119
      %p130 = scmp.eq.s32.totalorder %s32, 0
      %p131 = por %p129, %p130
      %p132 = scmp.ne.s32.totalorder %s118, %s119
      %p133 = scmp.eq.s32.totalorder %s33, 1
      %p134 = por %p132, %p133
      %p136 = scmp.ne.s32.totalorder %s119, %s135
      %p137 = scmp.eq.s32.totalorder %s33, 0
      %p138 = por %p136, %p137
      %p139 = scmp.le.s32.totalorder 1, %s27
      %p140 = scmp.lt.s32.totalorder %s27, 3
      %p141 = pnand %p139, %p140
      %p142 = pneg %p141
      // Predicated region
      $region9: #{tpu_custom_call.1} parent=5 // pred_check
        _
      $region10: #{tpu_custom_call.1} parent=5 // pred_check_branch
        %144 = sbr.rel (%p141) target = $region12
      $region11: #{tpu_custom_call.1} parent=5 // pred_region
        %s145 = ssub.s32 %s27, 1
      $region12: #{tpu_custom_call.1} parent=5 // pred_fallthru
        _
      %p146 = scmp.lt.s32.totalorder %s27, 2
      // Predicated region
      $region13: #{tpu_custom_call.1} parent=5 // pred_check
        %p147 = pneg %p146
      $region14: #{tpu_custom_call.1} parent=5 // pred_check_branch
        %149 = sbr.rel (%p147) target = $region16
      $region15: #{tpu_custom_call.1} parent=5 // pred_region
        // Predicated region
        $region17: #{tpu_custom_call.1} parent=15 // pred_check
          %p150 = pneg %p47
        $region18: #{tpu_custom_call.1} parent=15 // pred_check_branch
          %152 = sbr.rel (%p150) target = $region20
        $region19: #{tpu_custom_call.1} parent=15 // pred_region
          %s153 = sand.u32 %s37, 1
          %s154 = scalar_lea.sflag [#allocation5], %s153
          %s155 = sand.u32 %s37, 1
          %s156 = smul.addr %s155, 8
          %s157 = scalar_lea.vmem [#allocation4], %s156
          %s159 = ssub.s32 128, 128
          %160 = vsyncadd %s154, %s159
          %s161 = smul.addr %s27, 128
          %s162 = scalar_lea.hbm %s1, %s161
          %s164 = sshll.u32 %s157, 4
          %s165 = int_to_ptr.vmem [resolvable:$true] %s164
          %167 = dma.hbm_to_vmem [thread:$0]  %s162, 128, %s165, %s154
        $region20: #{tpu_custom_call.1} parent=15 // pred_fallthru
          _
        // Predicated region
        $region21: #{tpu_custom_call.1} parent=15 // pred_check
          %p168 = pneg %p73
        $region22: #{tpu_custom_call.1} parent=15 // pred_check_branch
          %170 = sbr.rel (%p168) target = $region24
        $region23: #{tpu_custom_call.1} parent=15 // pred_region
          %s171 = sand.u32 %s63, 1
          %s172 = scalar_lea.sflag [#allocation8], %s171
          %s173 = sand.u32 %s63, 1
          %s174 = smul.addr %s173, 128
          %s175 = scalar_lea.vmem [#allocation7], %s174
          %s177 = ssub.s32 2048, 2048
          %178 = vsyncadd %s172, %s177
          %s179 = smul.addr %s27, 16
          %s180 = smul.addr %s179, 128
          %s181 = scalar_lea.hbm %s2, %s180
          %s182 = sshll.u32 %s175, 4
          %s183 = int_to_ptr.vmem [resolvable:$true] %s182
          %188 = dma.hbm_to_vmem [thread:$0]  %s181, 2048, %s183, %s172, 128, 128, 8
        $region24: #{tpu_custom_call.1} parent=15 // pred_fallthru
          _
      $region16: #{tpu_custom_call.1} parent=5 // pred_fallthru
        _
      %p189 = scmp.le.s32.totalorder 1, %s27
      %p190 = scmp.lt.s32.totalorder %s27, 3
      %p191 = pnand %p189, %p190
      %p192 = pneg %p191
      // Predicated region
      $region25: #{tpu_custom_call.1} parent=5 // pred_check
        _
      $region26: #{tpu_custom_call.1} parent=5 // pred_check_branch
        %194 = sbr.rel (%p191) target = $region28
      $region27: #{tpu_custom_call.1} parent=5 // pred_region
        %s195 = ssub.s32 %s27, 1
        %s196 = sand.u32 %s40, 1
        %s197 = scalar_lea.sflag [#allocation5], %s196
        %s198 = sand.u32 %s40, 1
        %s199 = smul.addr %s198, 8
        %s200 = scalar_lea.vmem [#allocation4], %s199
        // Predicated region
        $region29: #{tpu_custom_call.1} parent=27 // pred_check
          %p201 = pneg %p53
        $region30: #{tpu_custom_call.1} parent=27 // pred_check_branch
          %203 = sbr.rel (%p201) target = $region32
        $region31: #{tpu_custom_call.1} parent=27 // pred_region
          %204 = dma.done %s197, 128
        $region32: #{tpu_custom_call.1} parent=27 // pred_fallthru
          _
        %s205 = sand.u32 %s66, 1
        %s206 = scalar_lea.sflag [#allocation8], %s205
        %s207 = sand.u32 %s66, 1
        %s208 = smul.addr %s207, 128
        %s209 = scalar_lea.vmem [#allocation7], %s208
        // Predicated region
        $region33: #{tpu_custom_call.1} parent=27 // pred_check
          %p210 = pneg %p79
        $region34: #{tpu_custom_call.1} parent=27 // pred_check_branch
          %212 = sbr.rel (%p210) target = $region36
        $region35: #{tpu_custom_call.1} parent=27 // pred_region
          %213 = dma.done %s206, 2048
        $region36: #{tpu_custom_call.1} parent=27 // pred_fallthru
          _
        %s214 = sand.u32 %s40, 1
        %s215 = scalar_lea.sflag [#allocation5], %s214
        %s216 = sand.u32 %s40, 1
        %s217 = smul.addr %s216, 8
        %s218 = scalar_lea.vmem [#allocation4], %s217
        %p219 = pneg %p53
        %p220 = pneg %p50
        %s221 = sand.u32 %s66, 1
        %s222 = scalar_lea.sflag [#allocation8], %s221
        %s223 = sand.u32 %s66, 1
        %s224 = smul.addr %s223, 128
        %s225 = scalar_lea.vmem [#allocation7], %s224
        %p226 = pneg %p79
        %p227 = pneg %p76
        %p228 = pneg %p105
        %p229 = pneg %p102
        %s230 = sand.u32 %s92, 1
        %s231 = scalar_lea.sflag [#allocation6], %s230
        %s232 = sand.u32 %s92, 1
        %s233 = smul.addr %s232, 8
        %s234 = scalar_lea.vmem [#allocation9], %s233
        %p235 = pneg %p131
        %p236 = pneg %p128
        %s237 = sand.u32 %s118, 1
        %s238 = scalar_lea.sflag [#allocation11], %s237
        %s239 = sand.u32 %s118, 1
        %s240 = smul.addr %s239, 8
        %s241 = scalar_lea.vmem [#allocation10], %s240
        %v242 = vld [vmem:[%s200] sm:$0xff]
        %v243 = vld [vmem:[%s209] sm:$0xff]
        %v244 = vld [vmem:[%s209 + $0x8] sm:$0xff]
        %v245 = vld [vmem:[%s209 + $0x10] sm:$0xff]
        %v246 = vld [vmem:[%s209 + $0x18] sm:$0xff]
        %v247 = vld [vmem:[%s209 + $0x20] sm:$0xff]
        %v248 = vld [vmem:[%s209 + $0x28] sm:$0xff]
        %v249 = vld [vmem:[%s209 + $0x30] sm:$0xff]
        %v250 = vld [vmem:[%s209 + $0x38] sm:$0xff]
        %v251 = vld [vmem:[%s209 + $0x40] sm:$0xff]
        %v252 = vld [vmem:[%s209 + $0x48] sm:$0xff]
        %v253 = vld [vmem:[%s209 + $0x50] sm:$0xff]
        %v254 = vld [vmem:[%s209 + $0x58] sm:$0xff]
        %v255 = vld [vmem:[%s209 + $0x60] sm:$0xff]
        %v256 = vld [vmem:[%s209 + $0x68] sm:$0xff]
        %v257 = vld [vmem:[%s209 + $0x70] sm:$0xff]
        %v258 = vld [vmem:[%s209 + $0x78] sm:$0xff]
        %259 = vmatprep.subr.mxu0 0.0
        %260 = vmatpush1.xpose.msra.mxu0 %v258
        %261 = vmatprep.subr.mxu0 0.0
        %262 = vmatpush1.xpose.msra.mxu0 %v257
        %263 = vmatprep.subr.mxu0 0.0
        %264 = vmatpush1.xpose.msra.mxu0 %v256
        %265 = vmatprep.subr.mxu0 0.0
        %266 = vmatpush1.xpose.msra.mxu0 %v255
        %267 = vmatprep.subr.mxu0 0.0
        %268 = vmatpush1.xpose.msra.mxu0 %v254
        %269 = vmatprep.subr.mxu0 0.0
        %270 = vmatpush1.xpose.msra.mxu0 %v253
        %271 = vmatprep.subr.mxu0 0.0
        %272 = vmatpush1.xpose.msra.mxu0 %v252
        %273 = vmatprep.subr.mxu0 0.0
        %274 = vmatpush1.xpose.msra.mxu0 %v251
        %275 = vmatprep.subr.mxu0 0.0
        %276 = vmatpush1.xpose.msra.mxu0 %v250
        %277 = vmatprep.subr.mxu0 0.0
        %278 = vmatpush1.xpose.msra.mxu0 %v249
        %279 = vmatprep.subr.mxu0 0.0
        %280 = vmatpush1.xpose.msra.mxu0 %v248
        %281 = vmatprep.subr.mxu0 0.0
        %282 = vmatpush1.xpose.msra.mxu0 %v247
        %283 = vmatprep.subr.mxu0 0.0
        %284 = vmatpush1.xpose.msra.mxu0 %v246
        %285 = vmatprep.subr.mxu0 0.0
        %286 = vmatpush1.xpose.msra.mxu0 %v245
        %287 = vmatprep.subr.mxu0 0.0
        %288 = vmatpush1.xpose.msra.mxu0 %v244
        %289 = vmatprep.subr.mxu0 0.0
        %290 = vmatpush1.xpose.msra.mxu0 %v243
        %291 = vmatprep.subr.mxu0 0.0
        %292 = vmatpush2.xpose.msra.mxu0 0.0
        %293 = vmatprep.subr.mxu0 0.0
        %294 = vmatpush2.xpose.msra.mxu0 0.0
        %295 = vmatprep.subr.mxu0 0.0
        %296 = vmatpush2.xpose.msra.mxu0 0.0
        %297 = vmatprep.subr.mxu0 0.0
        %298 = vmatpush2.xpose.msra.mxu0 0.0
        %299 = vmatprep.subr.mxu0 0.0
        %300 = vmatpush2.xpose.msra.mxu0 0.0
        %301 = vmatprep.subr.mxu0 0.0
        %302 = vmatpush2.xpose.msra.mxu0 0.0
        %303 = vmatprep.subr.mxu0 0.0
        %304 = vmatpush2.xpose.msra.mxu0 0.0
        %305 = vmatprep.subr.mxu0 0.0
        %306 = vmatpush2.xpose.msra.mxu0 0.0
        %307 = vmatprep.subr.mxu0 0.0
        %308 = vmatpush2.xpose.msra.mxu0 0.0
        %309 = vmatprep.subr.mxu0 0.0
        %310 = vmatpush2.xpose.msra.mxu0 0.0
        %311 = vmatprep.subr.mxu0 0.0
        %312 = vmatpush2.xpose.msra.mxu0 0.0
        %313 = vmatprep.subr.mxu0 0.0
        %314 = vmatpush2.xpose.msra.mxu0 0.0
        %315 = vmatprep.subr.mxu0 0.0
        %316 = vmatpush2.xpose.msra.mxu0 0.0
        %317 = vmatprep.subr.mxu0 0.0
        %318 = vmatpush2.xpose.msra.mxu0 0.0
        %319 = vmatprep.subr.mxu0 0.0
        %320 = vmatpush2.xpose.msra.mxu0 0.0
        %321 = vmatprep.subr.mxu0 0.0
        %322 = vmatpush2.xpose.msra.mxu0 0.0
        %323 = vmatprep.mubr.f32.mxu0 0.0
        %324 = vmatmul.mubr.f32.gmra.mxu0 %v242
        %v325 = vpop.f32.mrf.mxu0
        %v326 = vadd.f32 0.0, %v325
        %v327 = vpop.f32.mrf.mxu0
        %328 = vdwg.mxu0
        %s329 = sld [smem:[#allocation3 + %s32]]
        %v330 = vlaneseq
        %v331 = vand.u32 %v330, 127
        %v332 = vstv %s329
        %vm333 = vcmp.lt.s32.totalorder %v331, %v332
        %v334 = vsel %vm333, %v326, -1e+08
        %335 = vmax.xlane.f32.xlu0 %v334
        %v336 = vpop.xlane.xlu0 %335
        %v337 = vsub.f32 %v334, %v336
        %v338 = vmul.f32 %v337, 1.442695
        %v339 = vpow.pop %v338
        %340 = vadd.xlane.f32.xlu0 %v339
        %v341 = vpop.xlane.xlu0 %340
        %v342 = vrcp.pop %v341
        %v343 = vmul.f32 %v339, %v342
        %344 = vst [vmem:[%s241] sm:$0xff] %v343
        %345 = vmatprep.subr.mxu0 0.0
        %346 = vmatpush1.msra.mxu0 %v258
        %347 = vmatprep.subr.mxu0 0.0
        %348 = vmatpush1.msra.mxu0 %v257
        %349 = vmatprep.subr.mxu0 0.0
        %350 = vmatpush1.msra.mxu0 %v256
        %351 = vmatprep.subr.mxu0 0.0
        %352 = vmatpush1.msra.mxu0 %v255
        %353 = vmatprep.subr.mxu0 0.0
        %354 = vmatpush1.msra.mxu0 %v254
        %355 = vmatprep.subr.mxu0 0.0
        %356 = vmatpush1.msra.mxu0 %v253
        %357 = vmatprep.subr.mxu0 0.0
        %358 = vmatpush1.msra.mxu0 %v252
        %359 = vmatprep.subr.mxu0 0.0
        %360 = vmatpush1.msra.mxu0 %v251
        %361 = vmatprep.subr.mxu0 0.0
        %362 = vmatpush1.msra.mxu0 %v250
        %363 = vmatprep.subr.mxu0 0.0
        %364 = vmatpush1.msra.mxu0 %v249
        %365 = vmatprep.subr.mxu0 0.0
        %366 = vmatpush1.msra.mxu0 %v248
        %367 = vmatprep.subr.mxu0 0.0
        %368 = vmatpush1.msra.mxu0 %v247
        %369 = vmatprep.subr.mxu0 0.0
        %370 = vmatpush1.msra.mxu0 %v246
        %371 = vmatprep.subr.mxu0 0.0
        %372 = vmatpush1.msra.mxu0 %v245
        %373 = vmatprep.subr.mxu0 0.0
        %374 = vmatpush1.msra.mxu0 %v244
        %375 = vmatprep.subr.mxu0 0.0
        %376 = vmatpush1.msra.mxu0 %v243
        %377 = vmatprep.subr.mxu0 0.0
        %378 = vmatpush2.msra.mxu0 0.0
        %379 = vmatprep.subr.mxu0 0.0
        %380 = vmatpush2.msra.mxu0 0.0
        %381 = vmatprep.subr.mxu0 0.0
        %382 = vmatpush2.msra.mxu0 0.0
        %383 = vmatprep.subr.mxu0 0.0
        %384 = vmatpush2.msra.mxu0 0.0
        %385 = vmatprep.subr.mxu0 0.0
        %386 = vmatpush2.msra.mxu0 0.0
        %387 = vmatprep.subr.mxu0 0.0
        %388 = vmatpush2.msra.mxu0 0.0
        %389 = vmatprep.subr.mxu0 0.0
        %390 = vmatpush2.msra.mxu0 0.0
        %391 = vmatprep.subr.mxu0 0.0
        %392 = vmatpush2.msra.mxu0 0.0
        %393 = vmatprep.subr.mxu0 0.0
        %394 = vmatpush2.msra.mxu0 0.0
        %395 = vmatprep.subr.mxu0 0.0
        %396 = vmatpush2.msra.mxu0 0.0
        %397 = vmatprep.subr.mxu0 0.0
        %398 = vmatpush2.msra.mxu0 0.0
        %399 = vmatprep.subr.mxu0 0.0
        %400 = vmatpush2.msra.mxu0 0.0
        %401 = vmatprep.subr.mxu0 0.0
        %402 = vmatpush2.msra.mxu0 0.0
        %403 = vmatprep.subr.mxu0 0.0
        %404 = vmatpush2.msra.mxu0 0.0
        %405 = vmatprep.subr.mxu0 0.0
        %406 = vmatpush2.msra.mxu0 0.0
        %407 = vmatprep.subr.mxu0 0.0
        %408 = vmatpush2.msra.mxu0 0.0
        %409 = vmatprep.mubr.f32.mxu0 0.0
        %410 = vmatmul.mubr.f32.gmra.mxu0 %v343
        %v411 = vpop.f32.mrf.mxu0
        %v412 = vadd.f32 0.0, %v411
        %v413 = vpop.f32.mrf.mxu0
        %414 = vdwg.mxu0
        %415 = vst [vmem:[%s234] sm:$0xff] %v412
        %s416 = sand.u32 %s92, 1
        %s417 = scalar_lea.sflag [#allocation6], %s416
        %s418 = sand.u32 %s92, 1
        %s419 = smul.addr %s418, 8
        %s420 = scalar_lea.vmem [#allocation9], %s419
        %s421 = sand.u32 %s118, 1
        %s422 = scalar_lea.sflag [#allocation11], %s421
        %s423 = sand.u32 %s118, 1
        %s424 = smul.addr %s423, 8
        %s425 = scalar_lea.vmem [#allocation10], %s424
        // Predicated region
        $region37: #{tpu_custom_call.1} parent=27 // pred_check
          %p426 = pneg %p102
        $region38: #{tpu_custom_call.1} parent=27 // pred_check_branch
          %428 = sbr.rel (%p426) target = $region40
        $region39: #{tpu_custom_call.1} parent=27 // pred_region
          %s430 = ssub.s32 128, 128
          %431 = vsyncadd %s417, %s430
          %s432 = smul.addr %s32, 128
          %s433 = scalar_lea.hbm %s3, %s432
          %s435 = sshll.u32 %s420, 4
          %s436 = int_to_ptr.vmem [resolvable:$true] %s435
          %438 = dma.vmem_to_hbm [thread:$0]  %s436, 128, %s433, %s417
        $region40: #{tpu_custom_call.1} parent=27 // pred_fallthru
          _
        // Predicated region
        $region41: #{tpu_custom_call.1} parent=27 // pred_check
          %p439 = pneg %p128
        $region42: #{tpu_custom_call.1} parent=27 // pred_check_branch
          %441 = sbr.rel (%p439) target = $region44
        $region43: #{tpu_custom_call.1} parent=27 // pred_region
          %s443 = ssub.s32 128, 128
          %444 = vsyncadd %s422, %s443
          %s445 = smul.addr %s32, 128
          %s446 = scalar_lea.hbm %s4, %s445
          %s448 = sshll.u32 %s425, 4
          %s449 = int_to_ptr.vmem [resolvable:$true] %s448
          %451 = dma.vmem_to_hbm [thread:$0]  %s449, 128, %s446, %s422
        $region44: #{tpu_custom_call.1} parent=27 // pred_fallthru
          _
      $region28: #{tpu_custom_call.1} parent=5 // pred_fallthru
        _
      %p452 = scmp.le.s32.totalorder 2, %s27
      // Predicated region
      $region45: #{tpu_custom_call.1} parent=5 // pred_check
        %p453 = pneg %p452
      $region46: #{tpu_custom_call.1} parent=5 // pred_check_branch
        %455 = sbr.rel (%p453) target = $region48
      $region47: #{tpu_custom_call.1} parent=5 // pred_region
        %s456 = ssub.s32 %s27, 2
        // Predicated region
        $region49: #{tpu_custom_call.1} parent=47 // pred_check
          %p457 = pneg %p108
        $region50: #{tpu_custom_call.1} parent=47 // pred_check_branch
          %459 = sbr.rel (%p457) target = $region52
        $region51: #{tpu_custom_call.1} parent=47 // pred_region
          %s460 = sand.u32 %s93, 1
          %s461 = scalar_lea.sflag [#allocation6], %s460
          %s462 = sand.u32 %s93, 1
          %s463 = smul.addr %s462, 8
          %s464 = scalar_lea.vmem [#allocation9], %s463
          %465 = dma.done %s461, 128
        $region52: #{tpu_custom_call.1} parent=47 // pred_fallthru
          _
        // Predicated region
        $region53: #{tpu_custom_call.1} parent=47 // pred_check
          %p466 = pneg %p134
        $region54: #{tpu_custom_call.1} parent=47 // pred_check_branch
          %468 = sbr.rel (%p466) target = $region56
        $region55: #{tpu_custom_call.1} parent=47 // pred_region
          %s469 = sand.u32 %s119, 1
          %s470 = scalar_lea.sflag [#allocation11], %s469
          %s471 = sand.u32 %s119, 1
          %s472 = smul.addr %s471, 8
          %s473 = scalar_lea.vmem [#allocation10], %s472
          %474 = dma.done %s470, 128
        $region56: #{tpu_custom_call.1} parent=47 // pred_fallthru
          _
      $region48: #{tpu_custom_call.1} parent=5 // pred_fallthru
        _
    $region6: #{tpu_custom_call.1} parent=1 // loop_footer
      %s31 = sadd.s32 1, %s27
    $region7: #{tpu_custom_call.1} parent=1 // loop_footer_branch
      %26 = sbr.rel target = $region3
    $region8: #{tpu_custom_call.1} parent=1 // loop_exit
      _
    %475 = vsyncpa [#allocation5], 1
    %s476 = scalar_lea.sflag [#allocation5], 1
    %477 = vsyncpa %s476, 1
    %478 = vsyncpa [#allocation8], 1
    %s479 = scalar_lea.sflag [#allocation8], 1
    %480 = vsyncpa %s479, 1
    %481 = vsyncpa [#allocation6], 1
    %s482 = scalar_lea.sflag [#allocation6], 1
    %483 = vsyncpa %s482, 1
    %484 = vsyncpa [#allocation11], 1
    %s485 = scalar_lea.sflag [#allocation11], 1
    %486 = vsyncpa %s485, 1

</llo_original>
